<compile_context>
chip_gen: v5e
topology: v5e:2x2
jax: 0.10.0
libtpu: 0.0.40
codegen_flags: <defaults>
</compile_context>

<pallas_src>
import jax
import jax.numpy as jnp
from jax.experimental import pallas as pl
from jax.experimental.pallas import tpu as pltpu


def _disc_kernel(x_ref, wx_ref, wh_ref, b_ref, wp_ref, bp_ref,
                 out_ref, xg_sc):
    T, B, H = x_ref.shape

    # ---- Stage 1: input projection for ALL time steps in one MXU matmul. ----
    # (T*B, H) @ (H, 4H) -> (T*B, 4H); per-step bias folded in here.
    x_all = x_ref[...].reshape(T * B, H)
    xg_sc[...] = (
        jnp.dot(x_all, wx_ref[...], preferred_element_type=jnp.float32)
        + b_ref[...]
    ).reshape(T, B, 4 * H)

    # Hoist loop-invariant weight load out of the recurrence.
    wh = wh_ref[...]

    h0 = jnp.zeros((B, H), jnp.float32)
    c0 = jnp.zeros((B, H), jnp.float32)

    # ---- Stage 2: recurrence — only h @ Wh is on the serial chain. ----
    def step(t, carry):
        h, c = carry
        gates = xg_sc[t] + jnp.dot(h, wh, preferred_element_type=jnp.float32)
        i_g = jax.nn.sigmoid(gates[:, 0 * H:1 * H])
        f_g = jax.nn.sigmoid(gates[:, 1 * H:2 * H])
        g_g = jnp.tanh(gates[:, 2 * H:3 * H])
        o_g = jax.nn.sigmoid(gates[:, 3 * H:4 * H])
        c_new = f_g * c + i_g * g_g
        h_new = o_g * jnp.tanh(c_new)
        return (h_new, c_new)

    h, _ = jax.lax.fori_loop(0, T, step, (h0, c0), unroll=True)

    # ---- Stage 3: Linear(H, 2) + numerically-stable log-softmax. ----
    logits = (jnp.dot(h, wp_ref[...], preferred_element_type=jnp.float32)
              + bp_ref[...])
    m = jnp.max(logits, axis=-1, keepdims=True)
    s = logits - m
    lse = jnp.log(jnp.sum(jnp.exp(s), axis=-1, keepdims=True))
    out_ref[...] = (s - lse).astype(out_ref.dtype)


def discriminator_forward(x, wx, wh, b, wp, bp):
    """x: (T, B, H) float32. Returns (B, 2) log-probabilities."""
    T, B, H = x.shape
    return pl.pallas_call(
        _disc_kernel,
        out_shape=jax.ShapeDtypeStruct((B, 2), jnp.float32),
        grid_spec=pltpu.PrefetchScalarGridSpec(
            num_scalar_prefetch=0,
            grid=(1,),                                        # single invocation
            in_specs=[
                pl.BlockSpec((T, B, H), lambda i: (0, 0, 0)),  # whole x
                pl.BlockSpec((H, 4 * H), lambda i: (0, 0)),    # W_ih^T
                pl.BlockSpec((H, 4 * H), lambda i: (0, 0)),    # W_hh^T
                pl.BlockSpec((1, 4 * H), lambda i: (0, 0)),    # b_ih + b_hh
                pl.BlockSpec((H, 2), lambda i: (0, 0)),        # proj W^T
                pl.BlockSpec((1, 2), lambda i: (0, 0)),        # proj b
            ],
            out_specs=pl.BlockSpec((B, 2), lambda i: (0, 0)),
            scratch_shapes=[
                pltpu.VMEM((T, B, 4 * H), jnp.float32),        # pre-gates x@Wx+b
            ],
        ),
        compiler_params=pltpu.CompilerParams(
            dimension_semantics=("arbitrary",)),
    )(x, wx, wh, b, wp, bp)


def reference_forward(x, wx, wh, b, wp, bp):
    """Pure-JAX reference of the same math."""
    T, B, H = x.shape
    h = jnp.zeros((B, H), jnp.float32)
    c = jnp.zeros((B, H), jnp.float32)

    def step(carry, x_t):
        h, c = carry
        gates = x_t @ wx + h @ wh + b
        i_g = jax.nn.sigmoid(gates[:, 0 * H:1 * H])
        f_g = jax.nn.sigmoid(gates[:, 1 * H:2 * H])
        g_g = jnp.tanh(gates[:, 2 * H:3 * H])
        o_g = jax.nn.sigmoid(gates[:, 3 * H:4 * H])
        c = f_g * c + i_g * g_g
        h = o_g * jnp.tanh(c)
        return (h, c), None

    (h, c), _ = jax.lax.scan(step, (h, c), x)
    logits = h @ wp + bp
    return jax.nn.log_softmax(logits, axis=-1)


if __name__ == "__main__":
    T, B, H = 8, 4, 32  # seq len, batch, input_size == hidden size

    key = jax.random.PRNGKey(0)
    kx, k1, k2, k3, k4, k5, k6 = jax.random.split(key, 7)

    # Deterministic synthetic parameters (torch LSTMCell / Linear shapes,
    # stored transposed for x @ W layout).
    scale = 1.0 / jnp.sqrt(H)
    x = jax.random.normal(kx, (T, B, H), jnp.float32)
    w_ih = jax.random.uniform(k1, (4 * H, H), jnp.float32, -scale, scale)   # torch (4H, in)
    w_hh = jax.random.uniform(k2, (4 * H, H), jnp.float32, -scale, scale)   # torch (4H, H)
    b_ih = jax.random.uniform(k3, (4 * H,), jnp.float32, -scale, scale)
    b_hh = jax.random.uniform(k4, (4 * H,), jnp.float32, -scale, scale)
    w_p = jax.random.uniform(k5, (2, H), jnp.float32, -scale, scale)        # torch (2, H)
    b_p = jax.random.uniform(k6, (2,), jnp.float32, -scale, scale)

    wx = w_ih.T                                   # (H, 4H)
    wh = w_hh.T                                   # (H, 4H)
    b = (b_ih + b_hh).reshape(1, 4 * H)           # (1, 4H)
    wp = w_p.T                                    # (H, 2)
    bp = b_p.reshape(1, 2)                        # (1, 2)

    out = discriminator_forward(x, wx, wh, b, wp, bp)
    out = jax.block_until_ready(out)

    ref = reference_forward(x, wx, wh, b, wp, bp)
    assert out.shape == (B, 2)
    assert jnp.allclose(out, ref, atol=1e-5, rtol=1e-5), (out, ref)

    print("KERNEL_OK")
</pallas_src>

<mosaic_0001>
module attributes {stable_mosaic.version = 11 : i64} {
  func.func @_disc_kernel(%arg0: i32, %arg1: memref<8x4x32xf32, #tpu.memory_space<vmem>>, %arg2: memref<32x128xf32, #tpu.memory_space<vmem>>, %arg3: memref<32x128xf32, #tpu.memory_space<vmem>>, %arg4: memref<1x128xf32, #tpu.memory_space<vmem>>, %arg5: memref<32x2xf32, #tpu.memory_space<vmem>>, %arg6: memref<1x2xf32, #tpu.memory_space<vmem>>, %arg7: memref<4x2xf32, #tpu.memory_space<vmem>>, %arg8: memref<8x4x128xf32, #tpu.memory_space<vmem>>) attributes {dimension_semantics = [#tpu.dimension_semantics<arbitrary>], iteration_bounds = array<i64: 1>, scalar_prefetch = 0 : i64, scratch_operands = 1 : i64, tpu.core_type = #tpu.core_type<tc>, window_params = [{pipeline_mode = #tpu.pipeline_mode<synchronous>, transform_indices = @transform_0, window_bounds = array<i64: 8, 4, 32>}, {pipeline_mode = #tpu.pipeline_mode<synchronous>, transform_indices = @transform_1, window_bounds = array<i64: 32, 128>}, {pipeline_mode = #tpu.pipeline_mode<synchronous>, transform_indices = @transform_2, window_bounds = array<i64: 32, 128>}, {pipeline_mode = #tpu.pipeline_mode<synchronous>, transform_indices = @transform_3, window_bounds = array<i64: 1, 128>}, {pipeline_mode = #tpu.pipeline_mode<synchronous>, transform_indices = @transform_4, window_bounds = array<i64: 32, 2>}, {pipeline_mode = #tpu.pipeline_mode<synchronous>, transform_indices = @transform_5, window_bounds = array<i64: 1, 2>}, {pipeline_mode = #tpu.pipeline_mode<synchronous>, transform_indices = @transform_6, window_bounds = array<i64: 4, 2>}]} {
    %c0 = arith.constant 0 : index
    %c0_0 = arith.constant 0 : index
    %c0_1 = arith.constant 0 : index
    %0 = vector.load %arg1[%c0, %c0_0, %c0_1] : memref<8x4x32xf32, #tpu.memory_space<vmem>>, vector<8x4x32xf32>
    %1 = vector.shape_cast %0 : vector<8x4x32xf32> to vector<32x32xf32>
    %c0_2 = arith.constant 0 : index
    %c0_3 = arith.constant 0 : index
    %2 = vector.load %arg2[%c0_2, %c0_3] : memref<32x128xf32, #tpu.memory_space<vmem>>, vector<32x128xf32>
    %cst = arith.constant dense<0.000000e+00> : vector<32x128xf32>
    %3 = tpu.matmul %1, %2, %cst {dimension_numbers = #tpu.dot_dimension_numbers<[1], [0], [0], [1], [0, 0, 1, 1], [], []>} : vector<32x32xf32>, vector<32x128xf32>, vector<32x128xf32> -> vector<32x128xf32>
    %c0_4 = arith.constant 0 : index
    %c0_5 = arith.constant 0 : index
    %4 = vector.load %arg4[%c0_4, %c0_5] : memref<1x128xf32, #tpu.memory_space<vmem>>, vector<1x128xf32>
    %5 = vector.broadcast %4 : vector<1x128xf32> to vector<32x128xf32>
    %6 = arith.addf %3, %5 : vector<32x128xf32>
    %7 = vector.shape_cast %6 : vector<32x128xf32> to vector<8x4x128xf32>
    %c0_6 = arith.constant 0 : index
    %c0_7 = arith.constant 0 : index
    %c0_8 = arith.constant 0 : index
    %8 = vector.load %arg8[%c0_6, %c0_7, %c0_8] : memref<8x4x128xf32, #tpu.memory_space<vmem>>, vector<8x4x128xf32>
    tpu.vector_store %arg8[%c0_6, %c0_7, %c0_8], %7 {strides = array<i32>} : memref<8x4x128xf32, #tpu.memory_space<vmem>>, vector<8x4x128xf32>,
    %c0_9 = arith.constant 0 : index
    %c0_10 = arith.constant 0 : index
    %9 = vector.load %arg3[%c0_9, %c0_10] : memref<32x128xf32, #tpu.memory_space<vmem>>, vector<32x128xf32>
    %cst_11 = arith.constant 0.000000e+00 : f32
    %10 = vector.broadcast %cst_11 : f32 to vector<4x32xf32>
    %cst_12 = arith.constant 0.000000e+00 : f32
    %11 = vector.broadcast %cst_12 : f32 to vector<4x32xf32>
    %c0_i32 = arith.constant 0 : i32
    %12 = arith.index_cast %c0_i32 : i32 to index
    %c0_13 = arith.constant 0 : index
    %c0_14 = arith.constant 0 : index
    %13 = vector.load %arg8[%12, %c0_13, %c0_14] : memref<8x4x128xf32, #tpu.memory_space<vmem>>, vector<1x4x128xf32>
    %14 = vector.shape_cast %13 : vector<1x4x128xf32> to vector<4x128xf32>
    %cst_15 = arith.constant dense<0.000000e+00> : vector<4x128xf32>
    %15 = tpu.matmul %10, %9, %cst_15 {dimension_numbers = #tpu.dot_dimension_numbers<[1], [0], [0], [1], [0, 0, 1, 1], [], []>} : vector<4x32xf32>, vector<32x128xf32>, vector<4x128xf32> -> vector<4x128xf32>
    %16 = arith.addf %14, %15 : vector<4x128xf32>
    %17 = vector.extract_strided_slice %16 {offsets = [0, 0], sizes = [4, 32], strides = [1, 1]} : vector<4x128xf32> to vector<4x32xf32>
    %18 = arith.negf %17 : vector<4x32xf32>
    %19 = math.exp %18 : vector<4x32xf32>
    %cst_16 = arith.constant 1.000000e+00 : f32
    %20 = vector.broadcast %cst_16 : f32 to vector<4x32xf32>
    %21 = arith.addf %20, %19 : vector<4x32xf32>
    %22 = arith.divf %20, %21 : vector<4x32xf32>
    %23 = vector.extract_strided_slice %16 {offsets = [0, 32], sizes = [4, 32], strides = [1, 1]} : vector<4x128xf32> to vector<4x32xf32>
    %24 = arith.negf %23 : vector<4x32xf32>
    %25 = math.exp %24 : vector<4x32xf32>
    %cst_17 = arith.constant 1.000000e+00 : f32
    %26 = vector.broadcast %cst_17 : f32 to vector<4x32xf32>
    %27 = arith.addf %26, %25 : vector<4x32xf32>
    %28 = arith.divf %26, %27 : vector<4x32xf32>
    %29 = vector.extract_strided_slice %16 {offsets = [0, 64], sizes = [4, 32], strides = [1, 1]} : vector<4x128xf32> to vector<4x32xf32>
    %30 = math.tanh %29 : vector<4x32xf32>
    %31 = vector.extract_strided_slice %16 {offsets = [0, 96], sizes = [4, 32], strides = [1, 1]} : vector<4x128xf32> to vector<4x32xf32>
    %32 = arith.negf %31 : vector<4x32xf32>
    %33 = math.exp %32 : vector<4x32xf32>
    %cst_18 = arith.constant 1.000000e+00 : f32
    %34 = vector.broadcast %cst_18 : f32 to vector<4x32xf32>
    %35 = arith.addf %34, %33 : vector<4x32xf32>
    %36 = arith.divf %34, %35 : vector<4x32xf32>
    %37 = arith.mulf %28, %11 : vector<4x32xf32>
    %38 = arith.mulf %22, %30 : vector<4x32xf32>
    %39 = arith.addf %37, %38 : vector<4x32xf32>
    %40 = math.tanh %39 : vector<4x32xf32>
    %41 = arith.mulf %36, %40 : vector<4x32xf32>
    %c1_i32 = arith.constant 1 : i32
    %42 = arith.index_cast %c1_i32 : i32 to index
    %c0_19 = arith.constant 0 : index
    %c0_20 = arith.constant 0 : index
    %43 = vector.load %arg8[%42, %c0_19, %c0_20] : memref<8x4x128xf32, #tpu.memory_space<vmem>>, vector<1x4x128xf32>
    %44 = vector.shape_cast %43 : vector<1x4x128xf32> to vector<4x128xf32>
    %cst_21 = arith.constant dense<0.000000e+00> : vector<4x128xf32>
    %45 = tpu.matmul %41, %9, %cst_21 {dimension_numbers = #tpu.dot_dimension_numbers<[1], [0], [0], [1], [0, 0, 1, 1], [], []>} : vector<4x32xf32>, vector<32x128xf32>, vector<4x128xf32> -> vector<4x128xf32>
    %46 = arith.addf %44, %45 : vector<4x128xf32>
    %47 = vector.extract_strided_slice %46 {offsets = [0, 0], sizes = [4, 32], strides = [1, 1]} : vector<4x128xf32> to vector<4x32xf32>
    %48 = arith.negf %47 : vector<4x32xf32>
    %49 = math.exp %48 : vector<4x32xf32>
    %cst_22 = arith.constant 1.000000e+00 : f32
    %50 = vector.broadcast %cst_22 : f32 to vector<4x32xf32>
    %51 = arith.addf %50, %49 : vector<4x32xf32>
    %52 = arith.divf %50, %51 : vector<4x32xf32>
    %53 = vector.extract_strided_slice %46 {offsets = [0, 32], sizes = [4, 32], strides = [1, 1]} : vector<4x128xf32> to vector<4x32xf32>
    %54 = arith.negf %53 : vector<4x32xf32>
    %55 = math.exp %54 : vector<4x32xf32>
    %cst_23 = arith.constant 1.000000e+00 : f32
    %56 = vector.broadcast %cst_23 : f32 to vector<4x32xf32>
    %57 = arith.addf %56, %55 : vector<4x32xf32>
    %58 = arith.divf %56, %57 : vector<4x32xf32>
    %59 = vector.extract_strided_slice %46 {offsets = [0, 64], sizes = [4, 32], strides = [1, 1]} : vector<4x128xf32> to vector<4x32xf32>
    %60 = math.tanh %59 : vector<4x32xf32>
    %61 = vector.extract_strided_slice %46 {offsets = [0, 96], sizes = [4, 32], strides = [1, 1]} : vector<4x128xf32> to vector<4x32xf32>
    %62 = arith.negf %61 : vector<4x32xf32>
    %63 = math.exp %62 : vector<4x32xf32>
    %cst_24 = arith.constant 1.000000e+00 : f32
    %64 = vector.broadcast %cst_24 : f32 to vector<4x32xf32>
    %65 = arith.addf %64, %63 : vector<4x32xf32>
    %66 = arith.divf %64, %65 : vector<4x32xf32>
    %67 = arith.mulf %58, %39 : vector<4x32xf32>
    %68 = arith.mulf %52, %60 : vector<4x32xf32>
    %69 = arith.addf %67, %68 : vector<4x32xf32>
    %70 = math.tanh %69 : vector<4x32xf32>
    %71 = arith.mulf %66, %70 : vector<4x32xf32>
    %c2_i32 = arith.constant 2 : i32
    %72 = arith.index_cast %c2_i32 : i32 to index
    %c0_25 = arith.constant 0 : index
    %c0_26 = arith.constant 0 : index
    %73 = vector.load %arg8[%72, %c0_25, %c0_26] : memref<8x4x128xf32, #tpu.memory_space<vmem>>, vector<1x4x128xf32>
    %74 = vector.shape_cast %73 : vector<1x4x128xf32> to vector<4x128xf32>
    %cst_27 = arith.constant dense<0.000000e+00> : vector<4x128xf32>
    %75 = tpu.matmul %71, %9, %cst_27 {dimension_numbers = #tpu.dot_dimension_numbers<[1], [0], [0], [1], [0, 0, 1, 1], [], []>} : vector<4x32xf32>, vector<32x128xf32>, vector<4x128xf32> -> vector<4x128xf32>
    %76 = arith.addf %74, %75 : vector<4x128xf32>
    %77 = vector.extract_strided_slice %76 {offsets = [0, 0], sizes = [4, 32], strides = [1, 1]} : vector<4x128xf32> to vector<4x32xf32>
    %78 = arith.negf %77 : vector<4x32xf32>
    %79 = math.exp %78 : vector<4x32xf32>
    %cst_28 = arith.constant 1.000000e+00 : f32
    %80 = vector.broadcast %cst_28 : f32 to vector<4x32xf32>
    %81 = arith.addf %80, %79 : vector<4x32xf32>
    %82 = arith.divf %80, %81 : vector<4x32xf32>
    %83 = vector.extract_strided_slice %76 {offsets = [0, 32], sizes = [4, 32], strides = [1, 1]} : vector<4x128xf32> to vector<4x32xf32>
    %84 = arith.negf %83 : vector<4x32xf32>
    %85 = math.exp %84 : vector<4x32xf32>
    %cst_29 = arith.constant 1.000000e+00 : f32
    %86 = vector.broadcast %cst_29 : f32 to vector<4x32xf32>
    %87 = arith.addf %86, %85 : vector<4x32xf32>
    %88 = arith.divf %86, %87 : vector<4x32xf32>
    %89 = vector.extract_strided_slice %76 {offsets = [0, 64], sizes = [4, 32], strides = [1, 1]} : vector<4x128xf32> to vector<4x32xf32>
    %90 = math.tanh %89 : vector<4x32xf32>
    %91 = vector.extract_strided_slice %76 {offsets = [0, 96], sizes = [4, 32], strides = [1, 1]} : vector<4x128xf32> to vector<4x32xf32>
    %92 = arith.negf %91 : vector<4x32xf32>
    %93 = math.exp %92 : vector<4x32xf32>
    %cst_30 = arith.constant 1.000000e+00 : f32
    %94 = vector.broadcast %cst_30 : f32 to vector<4x32xf32>
    %95 = arith.addf %94, %93 : vector<4x32xf32>
    %96 = arith.divf %94, %95 : vector<4x32xf32>
    %97 = arith.mulf %88, %69 : vector<4x32xf32>
    %98 = arith.mulf %82, %90 : vector<4x32xf32>
    %99 = arith.addf %97, %98 : vector<4x32xf32>
    %100 = math.tanh %99 : vector<4x32xf32>
    %101 = arith.mulf %96, %100 : vector<4x32xf32>
    %c3_i32 = arith.constant 3 : i32
    %102 = arith.index_cast %c3_i32 : i32 to index
    %c0_31 = arith.constant 0 : index
    %c0_32 = arith.constant 0 : index
    %103 = vector.load %arg8[%102, %c0_31, %c0_32] : memref<8x4x128xf32, #tpu.memory_space<vmem>>, vector<1x4x128xf32>
    %104 = vector.shape_cast %103 : vector<1x4x128xf32> to vector<4x128xf32>
    %cst_33 = arith.constant dense<0.000000e+00> : vector<4x128xf32>
    %105 = tpu.matmul %101, %9, %cst_33 {dimension_numbers = #tpu.dot_dimension_numbers<[1], [0], [0], [1], [0, 0, 1, 1], [], []>} : vector<4x32xf32>, vector<32x128xf32>, vector<4x128xf32> -> vector<4x128xf32>
    %106 = arith.addf %104, %105 : vector<4x128xf32>
    %107 = vector.extract_strided_slice %106 {offsets = [0, 0], sizes = [4, 32], strides = [1, 1]} : vector<4x128xf32> to vector<4x32xf32>
    %108 = arith.negf %107 : vector<4x32xf32>
    %109 = math.exp %108 : vector<4x32xf32>
    %cst_34 = arith.constant 1.000000e+00 : f32
    %110 = vector.broadcast %cst_34 : f32 to vector<4x32xf32>
    %111 = arith.addf %110, %109 : vector<4x32xf32>
    %112 = arith.divf %110, %111 : vector<4x32xf32>
    %113 = vector.extract_strided_slice %106 {offsets = [0, 32], sizes = [4, 32], strides = [1, 1]} : vector<4x128xf32> to vector<4x32xf32>
    %114 = arith.negf %113 : vector<4x32xf32>
    %115 = math.exp %114 : vector<4x32xf32>
    %cst_35 = arith.constant 1.000000e+00 : f32
    %116 = vector.broadcast %cst_35 : f32 to vector<4x32xf32>
    %117 = arith.addf %116, %115 : vector<4x32xf32>
    %118 = arith.divf %116, %117 : vector<4x32xf32>
    %119 = vector.extract_strided_slice %106 {offsets = [0, 64], sizes = [4, 32], strides = [1, 1]} : vector<4x128xf32> to vector<4x32xf32>
    %120 = math.tanh %119 : vector<4x32xf32>
    %121 = vector.extract_strided_slice %106 {offsets = [0, 96], sizes = [4, 32], strides = [1, 1]} : vector<4x128xf32> to vector<4x32xf32>
    %122 = arith.negf %121 : vector<4x32xf32>
    %123 = math.exp %122 : vector<4x32xf32>
    %cst_36 = arith.constant 1.000000e+00 : f32
    %124 = vector.broadcast %cst_36 : f32 to vector<4x32xf32>
    %125 = arith.addf %124, %123 : vector<4x32xf32>
    %126 = arith.divf %124, %125 : vector<4x32xf32>
    %127 = arith.mulf %118, %99 : vector<4x32xf32>
    %128 = arith.mulf %112, %120 : vector<4x32xf32>
    %129 = arith.addf %127, %128 : vector<4x32xf32>
    %130 = math.tanh %129 : vector<4x32xf32>
    %131 = arith.mulf %126, %130 : vector<4x32xf32>
    %c4_i32 = arith.constant 4 : i32
    %132 = arith.index_cast %c4_i32 : i32 to index
    %c0_37 = arith.constant 0 : index
    %c0_38 = arith.constant 0 : index
    %133 = vector.load %arg8[%132, %c0_37, %c0_38] : memref<8x4x128xf32, #tpu.memory_space<vmem>>, vector<1x4x128xf32>
    %134 = vector.shape_cast %133 : vector<1x4x128xf32> to vector<4x128xf32>
    %cst_39 = arith.constant dense<0.000000e+00> : vector<4x128xf32>
    %135 = tpu.matmul %131, %9, %cst_39 {dimension_numbers = #tpu.dot_dimension_numbers<[1], [0], [0], [1], [0, 0, 1, 1], [], []>} : vector<4x32xf32>, vector<32x128xf32>, vector<4x128xf32> -> vector<4x128xf32>
    %136 = arith.addf %134, %135 : vector<4x128xf32>
    %137 = vector.extract_strided_slice %136 {offsets = [0, 0], sizes = [4, 32], strides = [1, 1]} : vector<4x128xf32> to vector<4x32xf32>
    %138 = arith.negf %137 : vector<4x32xf32>
    %139 = math.exp %138 : vector<4x32xf32>
    %cst_40 = arith.constant 1.000000e+00 : f32
    %140 = vector.broadcast %cst_40 : f32 to vector<4x32xf32>
    %141 = arith.addf %140, %139 : vector<4x32xf32>
    %142 = arith.divf %140, %141 : vector<4x32xf32>
    %143 = vector.extract_strided_slice %136 {offsets = [0, 32], sizes = [4, 32], strides = [1, 1]} : vector<4x128xf32> to vector<4x32xf32>
    %144 = arith.negf %143 : vector<4x32xf32>
    %145 = math.exp %144 : vector<4x32xf32>
    %cst_41 = arith.constant 1.000000e+00 : f32
    %146 = vector.broadcast %cst_41 : f32 to vector<4x32xf32>
    %147 = arith.addf %146, %145 : vector<4x32xf32>
    %148 = arith.divf %146, %147 : vector<4x32xf32>
    %149 = vector.extract_strided_slice %136 {offsets = [0, 64], sizes = [4, 32], strides = [1, 1]} : vector<4x128xf32> to vector<4x32xf32>
    %150 = math.tanh %149 : vector<4x32xf32>
    %151 = vector.extract_strided_slice %136 {offsets = [0, 96], sizes = [4, 32], strides = [1, 1]} : vector<4x128xf32> to vector<4x32xf32>
    %152 = arith.negf %151 : vector<4x32xf32>
    %153 = math.exp %152 : vector<4x32xf32>
    %cst_42 = arith.constant 1.000000e+00 : f32
    %154 = vector.broadcast %cst_42 : f32 to vector<4x32xf32>
    %155 = arith.addf %154, %153 : vector<4x32xf32>
    %156 = arith.divf %154, %155 : vector<4x32xf32>
    %157 = arith.mulf %148, %129 : vector<4x32xf32>
    %158 = arith.mulf %142, %150 : vector<4x32xf32>
    %159 = arith.addf %157, %158 : vector<4x32xf32>
    %160 = math.tanh %159 : vector<4x32xf32>
    %161 = arith.mulf %156, %160 : vector<4x32xf32>
    %c5_i32 = arith.constant 5 : i32
    %162 = arith.index_cast %c5_i32 : i32 to index
    %c0_43 = arith.constant 0 : index
    %c0_44 = arith.constant 0 : index
    %163 = vector.load %arg8[%162, %c0_43, %c0_44] : memref<8x4x128xf32, #tpu.memory_space<vmem>>, vector<1x4x128xf32>
    %164 = vector.shape_cast %163 : vector<1x4x128xf32> to vector<4x128xf32>
    %cst_45 = arith.constant dense<0.000000e+00> : vector<4x128xf32>
    %165 = tpu.matmul %161, %9, %cst_45 {dimension_numbers = #tpu.dot_dimension_numbers<[1], [0], [0], [1], [0, 0, 1, 1], [], []>} : vector<4x32xf32>, vector<32x128xf32>, vector<4x128xf32> -> vector<4x128xf32>
    %166 = arith.addf %164, %165 : vector<4x128xf32>
    %167 = vector.extract_strided_slice %166 {offsets = [0, 0], sizes = [4, 32], strides = [1, 1]} : vector<4x128xf32> to vector<4x32xf32>
    %168 = arith.negf %167 : vector<4x32xf32>
    %169 = math.exp %168 : vector<4x32xf32>
    %cst_46 = arith.constant 1.000000e+00 : f32
    %170 = vector.broadcast %cst_46 : f32 to vector<4x32xf32>
    %171 = arith.addf %170, %169 : vector<4x32xf32>
    %172 = arith.divf %170, %171 : vector<4x32xf32>
    %173 = vector.extract_strided_slice %166 {offsets = [0, 32], sizes = [4, 32], strides = [1, 1]} : vector<4x128xf32> to vector<4x32xf32>
    %174 = arith.negf %173 : vector<4x32xf32>
    %175 = math.exp %174 : vector<4x32xf32>
    %cst_47 = arith.constant 1.000000e+00 : f32
    %176 = vector.broadcast %cst_47 : f32 to vector<4x32xf32>
    %177 = arith.addf %176, %175 : vector<4x32xf32>
    %178 = arith.divf %176, %177 : vector<4x32xf32>
    %179 = vector.extract_strided_slice %166 {offsets = [0, 64], sizes = [4, 32], strides = [1, 1]} : vector<4x128xf32> to vector<4x32xf32>
    %180 = math.tanh %179 : vector<4x32xf32>
    %181 = vector.extract_strided_slice %166 {offsets = [0, 96], sizes = [4, 32], strides = [1, 1]} : vector<4x128xf32> to vector<4x32xf32>
    %182 = arith.negf %181 : vector<4x32xf32>
    %183 = math.exp %182 : vector<4x32xf32>
    %cst_48 = arith.constant 1.000000e+00 : f32
    %184 = vector.broadcast %cst_48 : f32 to vector<4x32xf32>
    %185 = arith.addf %184, %183 : vector<4x32xf32>
    %186 = arith.divf %184, %185 : vector<4x32xf32>
    %187 = arith.mulf %178, %159 : vector<4x32xf32>
    %188 = arith.mulf %172, %180 : vector<4x32xf32>
    %189 = arith.addf %187, %188 : vector<4x32xf32>
    %190 = math.tanh %189 : vector<4x32xf32>
    %191 = arith.mulf %186, %190 : vector<4x32xf32>
    %c6_i32 = arith.constant 6 : i32
    %192 = arith.index_cast %c6_i32 : i32 to index
    %c0_49 = arith.constant 0 : index
    %c0_50 = arith.constant 0 : index
    %193 = vector.load %arg8[%192, %c0_49, %c0_50] : memref<8x4x128xf32, #tpu.memory_space<vmem>>, vector<1x4x128xf32>
    %194 = vector.shape_cast %193 : vector<1x4x128xf32> to vector<4x128xf32>
    %cst_51 = arith.constant dense<0.000000e+00> : vector<4x128xf32>
    %195 = tpu.matmul %191, %9, %cst_51 {dimension_numbers = #tpu.dot_dimension_numbers<[1], [0], [0], [1], [0, 0, 1, 1], [], []>} : vector<4x32xf32>, vector<32x128xf32>, vector<4x128xf32> -> vector<4x128xf32>
    %196 = arith.addf %194, %195 : vector<4x128xf32>
    %197 = vector.extract_strided_slice %196 {offsets = [0, 0], sizes = [4, 32], strides = [1, 1]} : vector<4x128xf32> to vector<4x32xf32>
    %198 = arith.negf %197 : vector<4x32xf32>
    %199 = math.exp %198 : vector<4x32xf32>
    %cst_52 = arith.constant 1.000000e+00 : f32
    %200 = vector.broadcast %cst_52 : f32 to vector<4x32xf32>
    %201 = arith.addf %200, %199 : vector<4x32xf32>
    %202 = arith.divf %200, %201 : vector<4x32xf32>
    %203 = vector.extract_strided_slice %196 {offsets = [0, 32], sizes = [4, 32], strides = [1, 1]} : vector<4x128xf32> to vector<4x32xf32>
    %204 = arith.negf %203 : vector<4x32xf32>
    %205 = math.exp %204 : vector<4x32xf32>
    %cst_53 = arith.constant 1.000000e+00 : f32
    %206 = vector.broadcast %cst_53 : f32 to vector<4x32xf32>
    %207 = arith.addf %206, %205 : vector<4x32xf32>
    %208 = arith.divf %206, %207 : vector<4x32xf32>
    %209 = vector.extract_strided_slice %196 {offsets = [0, 64], sizes = [4, 32], strides = [1, 1]} : vector<4x128xf32> to vector<4x32xf32>
    %210 = math.tanh %209 : vector<4x32xf32>
    %211 = vector.extract_strided_slice %196 {offsets = [0, 96], sizes = [4, 32], strides = [1, 1]} : vector<4x128xf32> to vector<4x32xf32>
    %212 = arith.negf %211 : vector<4x32xf32>
    %213 = math.exp %212 : vector<4x32xf32>
    %cst_54 = arith.constant 1.000000e+00 : f32
    %214 = vector.broadcast %cst_54 : f32 to vector<4x32xf32>
    %215 = arith.addf %214, %213 : vector<4x32xf32>
    %216 = arith.divf %214, %215 : vector<4x32xf32>
    %217 = arith.mulf %208, %189 : vector<4x32xf32>
    %218 = arith.mulf %202, %210 : vector<4x32xf32>
    %219 = arith.addf %217, %218 : vector<4x32xf32>
    %220 = math.tanh %219 : vector<4x32xf32>
    %221 = arith.mulf %216, %220 : vector<4x32xf32>
    %c7_i32 = arith.constant 7 : i32
    %222 = arith.index_cast %c7_i32 : i32 to index
    %c0_55 = arith.constant 0 : index
    %c0_56 = arith.constant 0 : index
    %223 = vector.load %arg8[%222, %c0_55, %c0_56] : memref<8x4x128xf32, #tpu.memory_space<vmem>>, vector<1x4x128xf32>
    %224 = vector.shape_cast %223 : vector<1x4x128xf32> to vector<4x128xf32>
    %cst_57 = arith.constant dense<0.000000e+00> : vector<4x128xf32>
    %225 = tpu.matmul %221, %9, %cst_57 {dimension_numbers = #tpu.dot_dimension_numbers<[1], [0], [0], [1], [0, 0, 1, 1], [], []>} : vector<4x32xf32>, vector<32x128xf32>, vector<4x128xf32> -> vector<4x128xf32>
    %226 = arith.addf %224, %225 : vector<4x128xf32>
    %227 = vector.extract_strided_slice %226 {offsets = [0, 0], sizes = [4, 32], strides = [1, 1]} : vector<4x128xf32> to vector<4x32xf32>
    %228 = arith.negf %227 : vector<4x32xf32>
    %229 = math.exp %228 : vector<4x32xf32>
    %cst_58 = arith.constant 1.000000e+00 : f32
    %230 = vector.broadcast %cst_58 : f32 to vector<4x32xf32>
    %231 = arith.addf %230, %229 : vector<4x32xf32>
    %232 = arith.divf %230, %231 : vector<4x32xf32>
    %233 = vector.extract_strided_slice %226 {offsets = [0, 32], sizes = [4, 32], strides = [1, 1]} : vector<4x128xf32> to vector<4x32xf32>
    %234 = arith.negf %233 : vector<4x32xf32>
    %235 = math.exp %234 : vector<4x32xf32>
    %cst_59 = arith.constant 1.000000e+00 : f32
    %236 = vector.broadcast %cst_59 : f32 to vector<4x32xf32>
    %237 = arith.addf %236, %235 : vector<4x32xf32>
    %238 = arith.divf %236, %237 : vector<4x32xf32>
    %239 = vector.extract_strided_slice %226 {offsets = [0, 64], sizes = [4, 32], strides = [1, 1]} : vector<4x128xf32> to vector<4x32xf32>
    %240 = math.tanh %239 : vector<4x32xf32>
    %241 = vector.extract_strided_slice %226 {offsets = [0, 96], sizes = [4, 32], strides = [1, 1]} : vector<4x128xf32> to vector<4x32xf32>
    %242 = arith.negf %241 : vector<4x32xf32>
    %243 = math.exp %242 : vector<4x32xf32>
    %cst_60 = arith.constant 1.000000e+00 : f32
    %244 = vector.broadcast %cst_60 : f32 to vector<4x32xf32>
    %245 = arith.addf %244, %243 : vector<4x32xf32>
    %246 = arith.divf %244, %245 : vector<4x32xf32>
    %247 = arith.mulf %238, %219 : vector<4x32xf32>
    %248 = arith.mulf %232, %240 : vector<4x32xf32>
    %249 = arith.addf %247, %248 : vector<4x32xf32>
    %250 = math.tanh %249 : vector<4x32xf32>
    %251 = arith.mulf %246, %250 : vector<4x32xf32>
    %c8_i32 = arith.constant 8 : i32
    %c0_61 = arith.constant 0 : index
    %c0_62 = arith.constant 0 : index
    %252 = vector.load %arg5[%c0_61, %c0_62] : memref<32x2xf32, #tpu.memory_space<vmem>>, vector<32x2xf32>
    %cst_63 = arith.constant dense<0.000000e+00> : vector<4x2xf32>
    %253 = tpu.matmul %251, %252, %cst_63 {dimension_numbers = #tpu.dot_dimension_numbers<[1], [0], [0], [1], [0, 0, 1, 1], [], []>} : vector<4x32xf32>, vector<32x2xf32>, vector<4x2xf32> -> vector<4x2xf32>
    %c0_64 = arith.constant 0 : index
    %c0_65 = arith.constant 0 : index
    %254 = vector.load %arg6[%c0_64, %c0_65] : memref<1x2xf32, #tpu.memory_space<vmem>>, vector<1x2xf32>
    %255 = vector.broadcast %254 : vector<1x2xf32> to vector<4x2xf32>
    %256 = arith.addf %253, %255 : vector<4x2xf32>
    %cst_66 = arith.constant dense<0xFF800000> : vector<4xf32>
    %257 = vector.multi_reduction <maximumf>, %256, %cst_66 [1] : vector<4x2xf32> to vector<4xf32>
    %258 = vector.shape_cast %257 : vector<4xf32> to vector<4x1xf32>
    %259 = vector.broadcast %258 : vector<4x1xf32> to vector<4x2xf32>
    %260 = arith.subf %256, %259 : vector<4x2xf32>
    %261 = math.exp %260 : vector<4x2xf32>
    %cst_67 = arith.constant dense<0.000000e+00> : vector<4xf32>
    %262 = vector.multi_reduction <add>, %261, %cst_67 [1] : vector<4x2xf32> to vector<4xf32>
    %263 = vector.shape_cast %262 : vector<4xf32> to vector<4x1xf32>
    %264 = math.log %263 : vector<4x1xf32>
    %265 = vector.broadcast %264 : vector<4x1xf32> to vector<4x2xf32>
    %266 = arith.subf %260, %265 : vector<4x2xf32>
    %c0_68 = arith.constant 0 : index
    %c0_69 = arith.constant 0 : index
    %267 = vector.load %arg7[%c0_68, %c0_69] : memref<4x2xf32, #tpu.memory_space<vmem>>, vector<4x2xf32>
    tpu.vector_store %arg7[%c0_68, %c0_69], %266 {strides = array<i32>} : memref<4x2xf32, #tpu.memory_space<vmem>>, vector<4x2xf32>,
    return
  }
  func.func @transform_0(%arg0: i32) -> (i32, i32, i32) {
    %c0_i32 = arith.constant 0 : i32
    %c0_i32_0 = arith.constant 0 : i32
    %c0_i32_1 = arith.constant 0 : i32
    %c0_i32_2 = arith.constant 0 : i32
    return %c0_i32, %c0_i32_0, %c0_i32_1 : i32, i32, i32
  }
  func.func @transform_1(%arg0: i32) -> (i32, i32) {
    %c0_i32 = arith.constant 0 : i32
    %c0_i32_0 = arith.constant 0 : i32
    %c0_i32_1 = arith.constant 0 : i32
    return %c0_i32, %c0_i32_0 : i32, i32
  }
  func.func @transform_2(%arg0: i32) -> (i32, i32) {
    %c0_i32 = arith.constant 0 : i32
    %c0_i32_0 = arith.constant 0 : i32
    %c0_i32_1 = arith.constant 0 : i32
    return %c0_i32, %c0_i32_0 : i32, i32
  }
  func.func @transform_3(%arg0: i32) -> (i32, i32) {
    %c0_i32 = arith.constant 0 : i32
    %c0_i32_0 = arith.constant 0 : i32
    %c0_i32_1 = arith.constant 0 : i32
    return %c0_i32, %c0_i32_0 : i32, i32
  }
  func.func @transform_4(%arg0: i32) -> (i32, i32) {
    %c0_i32 = arith.constant 0 : i32
    %c0_i32_0 = arith.constant 0 : i32
    %c0_i32_1 = arith.constant 0 : i32
    return %c0_i32, %c0_i32_0 : i32, i32
  }
  func.func @transform_5(%arg0: i32) -> (i32, i32) {
    %c0_i32 = arith.constant 0 : i32
    %c0_i32_0 = arith.constant 0 : i32
    %c0_i32_1 = arith.constant 0 : i32
    return %c0_i32, %c0_i32_0 : i32, i32
  }
  func.func @transform_6(%arg0: i32) -> (i32, i32) {
    %c0_i32 = arith.constant 0 : i32
    %c0_i32_0 = arith.constant 0 : i32
    %c0_i32_1 = arith.constant 0 : i32
    return %c0_i32, %c0_i32_0 : i32, i32
  }
}

</mosaic_0001>

<llo_original>
// kernel: tpu_custom_call.1
$region0: #{tpu_custom_call.1}
  #allocation0 [shape = 'u32[]', space=smem, size = 0x4, offset = 0x4, fixed_abs, tag = 'smem constant byte address 0x4 - core index']
  #allocation1 [shape = 'u32[72,128]{1,0:T(1,128)}', space=vmem, size = 0x9000, scoped, tag = 'internal scratch']
  #allocation2 [shape = 'f32[8,4,128]{2,1,0:T(4,128)}', space=vmem, size = 0x4000, scoped, tag = 'scratch operand']
  %s0 = inlined_call_operand.vmem [shape: f32[8,4,32], index: 0, kind: input, shape index: {}]
  %s1 = inlined_call_operand.hbm [shape: f32[32,128], index: 1, kind: input, shape index: {}]
  %s2 = inlined_call_operand.hbm [shape: f32[32,128], index: 2, kind: input, shape index: {}]
  %s3 = inlined_call_operand.vmem [shape: f32[1,128], index: 3, kind: input, shape index: {}]
  %s4 = inlined_call_operand.vmem [shape: f32[32,2], index: 4, kind: input, shape index: {}]
  %s5 = inlined_call_operand.vmem [shape: f32[1,2], index: 5, kind: input, shape index: {}]
  %s6 = inlined_call_operand.vmem [shape: f32[4,2], index: 6, kind: output, shape index: {}]
  %s7 = sld [smem:[#allocation0]]
  $region42: #{tpu_custom_call.1} parent=0
    _
  %s9 = ssub.s32 1, %s7
  %s10 = scalar_select 0, %s9, %s7
  $region1: #{tpu_custom_call.1} parent=0
    #allocation3 [shape = 'u8[16384]{0}', space=vmem, size = 0x4000, scoped, tag = 'input window, operand 1, single buffered']
    #allocation4 [shape = 's32[1]{0}', space=sflag, size = 0x4, scoped, tag = 'scoped memory for tpu_custom_call.1']
    #allocation5 [shape = 'u8[16384]{0}', space=vmem, size = 0x4000, scoped, tag = 'input window, operand 2, single buffered']
    #allocation6 [shape = 's32[1]{0}', space=sflag, size = 0x4, scoped, tag = 'scoped memory for tpu_custom_call.1']
    %11 = vsyncpa [#allocation4], 0
    %12 = vsyncpa [#allocation6], 0
    // Predicated region
    $region2: #{tpu_custom_call.1} parent=1 // pred_check
      _
    $region3: #{tpu_custom_call.1} parent=1 // pred_check_branch
      %14 = sbr.rel (0) target = $region5
    $region4: #{tpu_custom_call.1} parent=1 // pred_region
      _
    $region5: #{tpu_custom_call.1} parent=1 // pred_fallthru
      _
    // Predicated region
    $region6: #{tpu_custom_call.1} parent=1 // pred_check
      _
    $region7: #{tpu_custom_call.1} parent=1 // pred_check_branch
      %16 = sbr.rel (0) target = $region9
    $region8: #{tpu_custom_call.1} parent=1 // pred_region
      %18 = vsyncadd [#allocation4], 0
      %s19 = sshll.u32 %s1, 4
      %s20 = int_to_ptr.hbm [resolvable:$true] %s19
      %s21 = sshll.u32 [#allocation3], 4
      %s22 = int_to_ptr.vmem [resolvable:$true] %s21
      %27 = dma.hbm_to_vmem [thread:$0]  %s20, 512, %s22, [#allocation4], 128, 128, 8
    $region9: #{tpu_custom_call.1} parent=1 // pred_fallthru
      _
    // Predicated region
    $region10: #{tpu_custom_call.1} parent=1 // pred_check
      _
    $region11: #{tpu_custom_call.1} parent=1 // pred_check_branch
      %29 = sbr.rel (0) target = $region13
    $region12: #{tpu_custom_call.1} parent=1 // pred_region
      %31 = vsyncadd [#allocation6], 0
      %s32 = sshll.u32 %s2, 4
      %s33 = int_to_ptr.hbm [resolvable:$true] %s32
      %s34 = sshll.u32 [#allocation5], 4
      %s35 = int_to_ptr.vmem [resolvable:$true] %s34
      %40 = dma.hbm_to_vmem [thread:$0]  %s33, 512, %s35, [#allocation6], 128, 128, 8
    $region13: #{tpu_custom_call.1} parent=1 // pred_fallthru
      _
    // Predicated region
    $region14: #{tpu_custom_call.1} parent=1 // pred_check
      _
    $region15: #{tpu_custom_call.1} parent=1 // pred_check_branch
      %42 = sbr.rel (0) target = $region17
    $region16: #{tpu_custom_call.1} parent=1 // pred_region
      _
    $region17: #{tpu_custom_call.1} parent=1 // pred_fallthru
      _
    // Predicated region
    $region18: #{tpu_custom_call.1} parent=1 // pred_check
      _
    $region19: #{tpu_custom_call.1} parent=1 // pred_check_branch
      %44 = sbr.rel (0) target = $region21
    $region20: #{tpu_custom_call.1} parent=1 // pred_region
      _
    $region21: #{tpu_custom_call.1} parent=1 // pred_fallthru
      _
    // Predicated region
    $region22: #{tpu_custom_call.1} parent=1 // pred_check
      _
    $region23: #{tpu_custom_call.1} parent=1 // pred_check_branch
      %46 = sbr.rel (0) target = $region25
    $region24: #{tpu_custom_call.1} parent=1 // pred_region
      _
    $region25: #{tpu_custom_call.1} parent=1 // pred_fallthru
      _
    // Predicated region
    $region26: #{tpu_custom_call.1} parent=1 // pred_check
      _
    $region27: #{tpu_custom_call.1} parent=1 // pred_check_branch
      %48 = sbr.rel (0) target = $region29
    $region28: #{tpu_custom_call.1} parent=1 // pred_region
      %50 = dma.done [#allocation4], 512
    $region29: #{tpu_custom_call.1} parent=1 // pred_fallthru
      _
    // Predicated region
    $region30: #{tpu_custom_call.1} parent=1 // pred_check
      _
    $region31: #{tpu_custom_call.1} parent=1 // pred_check_branch
      %52 = sbr.rel (0) target = $region33
    $region32: #{tpu_custom_call.1} parent=1 // pred_region
      %54 = dma.done [#allocation6], 512
    $region33: #{tpu_custom_call.1} parent=1 // pred_fallthru
      _
    %v55 = vld [vmem:[%s0] sm:$0xf]
    %v56 = vld [vmem:[%s0 + $0x4] sm:$0xf]
    %v57 = vld [vmem:[%s0 + $0x8] sm:$0xf]
    %v58 = vld [vmem:[%s0 + $0xc] sm:$0xf]
    %v59 = vld [vmem:[%s0 + $0x10] sm:$0xf]
    %v60 = vld [vmem:[%s0 + $0x14] sm:$0xf]
    %v61 = vld [vmem:[%s0 + $0x18] sm:$0xf]
    %v62 = vld [vmem:[%s0 + $0x1c] sm:$0xf]
    %v63 = vld [vmem:[#allocation3] sm:$0xff]
    %v64 = vld [vmem:[#allocation3 + $0x8] sm:$0xff]
    %v65 = vld [vmem:[#allocation3 + $0x10] sm:$0xff]
    %v66 = vld [vmem:[#allocation3 + $0x18] sm:$0xff]
    %v67 = vld [vmem:[%s3] sm:$0x1]
    %v69 = vperm.slane %v67, 0
    %79 = vst [vmem:[#allocation1] ss:$2 sm:$0xff] %v55
    %s80 = scalar_lea.vmem [#allocation1], 1
    %81 = vst [vmem:[%s80] ss:$2 sm:$0xff] %v56
    %s82 = scalar_lea.vmem [#allocation1], 16
    %83 = vst [vmem:[%s82] ss:$2 sm:$0xff] %v57
    %s84 = scalar_lea.vmem [#allocation1], 17
    %85 = vst [vmem:[%s84] ss:$2 sm:$0xff] %v58
    %s86 = scalar_lea.vmem [#allocation1], 32
    %87 = vst [vmem:[%s86] ss:$2 sm:$0xff] %v59
    %s88 = scalar_lea.vmem [#allocation1], 33
    %89 = vst [vmem:[%s88] ss:$2 sm:$0xff] %v60
    %s90 = scalar_lea.vmem [#allocation1], 48
    %91 = vst [vmem:[%s90] ss:$2 sm:$0xff] %v61
    %s92 = scalar_lea.vmem [#allocation1], 49
    %93 = vst [vmem:[%s92] ss:$2 sm:$0xff] %v62
    %v94 = vld.sshfl [vmem:[#allocation1] sm:$0xff pattern:$0x75316420]
    %v95 = vld.sshfl [vmem:[#allocation1 + $0x10] sm:$0xff pattern:$0x75316420]
    %v96 = vld.sshfl [vmem:[#allocation1 + $0x20] sm:$0xff pattern:$0x75316420]
    %v97 = vld.sshfl [vmem:[#allocation1 + $0x30] sm:$0xff pattern:$0x75316420]
    %vm98 = vcmask 261120
    %v99 = vsel %vm98, %v94, 0
    %v101 = vsel %vm98, %v95, 0
    %v103 = vsel %vm98, %v96, 0
    %v105 = vsel %vm98, %v97, 0
    %107 = vmatpush.msra.mxu0 0.0
    %108 = vmatpush.msra.mxu0 0.0
    %109 = vmatpush.msra.mxu0 0.0
    %110 = vmatpush.msra.mxu0 0.0
    %111 = vmatpush.msra.mxu0 0.0
    %112 = vmatpush.msra.mxu0 0.0
    %113 = vmatpush.msra.mxu0 0.0
    %114 = vmatpush.msra.mxu0 0.0
    %115 = vmatpush.msra.mxu0 0.0
    %116 = vmatpush.msra.mxu0 0.0
    %117 = vmatpush.msra.mxu0 0.0
    %118 = vmatpush.msra.mxu0 0.0
    %119 = vmatpush.msra.mxu0 %v66
    %120 = vmatpush.msra.mxu0 %v65
    %121 = vmatpush.msra.mxu0 %v64
    %122 = vmatpush.msra.mxu0 %v63
    %123 = vmatmul.f32.gmra.mxu0 %v99
    %v124 = vpop.f32.mrf.mxu0
    %v125 = vadd.f32 %v69, %v124
    %126 = vmatmul.f32.gmra.mxu0 %v101
    %v127 = vpop.f32.mrf.mxu0
    %v128 = vadd.f32 %v69, %v127
    %129 = vmatmul.f32.gmra.mxu0 %v103
    %v130 = vpop.f32.mrf.mxu0
    %v131 = vadd.f32 %v69, %v130
    %132 = vmatmul.f32.gmra.mxu0 %v105
    %v133 = vpop.f32.mrf.mxu0
    %v134 = vadd.f32 %v69, %v133
    %135 = vdwg.mxu0
    %v140 = vrot.slane %v125, 4
    %v141 = vrot.slane %v128, 4
    %v142 = vrot.slane %v131, 4
    %v143 = vrot.slane %v134, 4
    %148 = vst [vmem:[#allocation2] sm:$0xf] %v125
    %149 = vst [vmem:[#allocation2 + $0x4] sm:$0xf] %v140
    %150 = vst [vmem:[#allocation2 + $0x8] sm:$0xf] %v128
    %151 = vst [vmem:[#allocation2 + $0xc] sm:$0xf] %v141
    %152 = vst [vmem:[#allocation2 + $0x10] sm:$0xf] %v131
    %153 = vst [vmem:[#allocation2 + $0x14] sm:$0xf] %v142
    %154 = vst [vmem:[#allocation2 + $0x18] sm:$0xf] %v134
    %155 = vst [vmem:[#allocation2 + $0x1c] sm:$0xf] %v143
    %v156 = vld [vmem:[#allocation5] sm:$0xff]
    %v157 = vld [vmem:[#allocation5 + $0x8] sm:$0xff]
    %v158 = vld [vmem:[#allocation5 + $0x10] sm:$0xff]
    %v159 = vld [vmem:[#allocation5 + $0x18] sm:$0xff]
    %v160 = vld [vmem:[#allocation2] sm:$0xf]
    %v162 = vsel %vm98, 0.0, 0
    %164 = vmatpush.msra.mxu0 0.0
    %165 = vmatpush.msra.mxu0 0.0
    %166 = vmatpush.msra.mxu0 0.0
    %167 = vmatpush.msra.mxu0 0.0
    %168 = vmatpush.msra.mxu0 0.0
    %169 = vmatpush.msra.mxu0 0.0
    %170 = vmatpush.msra.mxu0 0.0
    %171 = vmatpush.msra.mxu0 0.0
    %172 = vmatpush.msra.mxu0 0.0
    %173 = vmatpush.msra.mxu0 0.0
    %174 = vmatpush.msra.mxu0 0.0
    %175 = vmatpush.msra.mxu0 0.0
    %176 = vmatpush.msra.mxu0 %v159
    %177 = vmatpush.msra.mxu0 %v158
    %178 = vmatpush.msra.mxu0 %v157
    %179 = vmatpush.msra.mxu0 %v156
    %180 = vmatmul.f32.gmra.mxu0 %v162
    %v181 = vpop.f32.mrf.mxu0
    %v182 = vadd.f32 0.0, %v181
    %183 = vdwg.mxu0
    %v184 = vadd.f32 %v160, %v182
    %v185 = vxor.u32 %v184, 2147483648
    %v186 = vmul.f32 %v185, 1.442695
    %v187 = vpow.pop %v186
    %v188 = vadd.f32 %v187, 1.0
    %v189 = vrcp.pop %v188
    %v190 = vmul.f32 %v188, %v189
    %v191 = vsub.f32 1.0, %v190
    %v192 = vmul.f32 %v189, %v191
    %v193 = vadd.f32 %v189, %v192
    %vm194 = vweird.f32 %v188
    %vm195 = vweird.f32 %v189
    %vm196 = vmor %vm194, %vm195
    %v197 = vsel %vm196, %v189, %v193
    %v198 = vand.u32 2147483647, %v188
    %vm199 = vcmp.eq.f32.partialorder %v198, 8.507059e+37
    %v200 = vand.u32 %v188, 2147483648
    %v201 = vor.u32 1.1754944e-38, %v200
    %v202 = vsel %vm199, %v201, %v197
    %v203 = vmul.f32 1.0, %v202
    %v204 = vtanh.pop %v184
    %v205 = vmul.f32 %v203, 0.0
    %207 = vrot.lane.b32.xlu0 %v204, 64
    %v208 = vpop.permute.xlu0 %207
    %v210 = vmul.f32 %v203, %v208
    %212 = vrot.lane.b32.xlu0 %v210, 32
    %v213 = vpop.permute.xlu0 %212
    %v215 = vadd.f32 %v205, %v213
    %v216 = vtanh.pop %v215
    %218 = vrot.lane.b32.xlu0 %v216, 64
    %v219 = vpop.permute.xlu0 %218
    %v221 = vmul.f32 %v203, %v219
    %s222 = scalar_lea.vmem [#allocation2], 4
    %v223 = vld [vmem:[%s222] sm:$0xf]
    %225 = vrot.lane.b32.xlu0 %v221, 32
    %v226 = vpop.permute.xlu0 %225
    %v227 = vsel %vm98, %v226, 0
    %229 = vmatpush.msra.mxu0 0.0
    %230 = vmatpush.msra.mxu0 0.0
    %231 = vmatpush.msra.mxu0 0.0
    %232 = vmatpush.msra.mxu0 0.0
    %233 = vmatpush.msra.mxu0 0.0
    %234 = vmatpush.msra.mxu0 0.0
    %235 = vmatpush.msra.mxu0 0.0
    %236 = vmatpush.msra.mxu0 0.0
    %237 = vmatpush.msra.mxu0 0.0
    %238 = vmatpush.msra.mxu0 0.0
    %239 = vmatpush.msra.mxu0 0.0
    %240 = vmatpush.msra.mxu0 0.0
    %241 = vmatpush.msra.mxu0 %v159
    %242 = vmatpush.msra.mxu0 %v158
    %243 = vmatpush.msra.mxu0 %v157
    %244 = vmatpush.msra.mxu0 %v156
    %245 = vmatmul.f32.gmra.mxu0 %v227
    %v246 = vpop.f32.mrf.mxu0
    %v247 = vadd.f32 0.0, %v246
    %248 = vdwg.mxu0
    %v249 = vadd.f32 %v223, %v247
    %v250 = vxor.u32 %v249, 2147483648
    %v251 = vmul.f32 %v250, 1.442695
    %v252 = vpow.pop %v251
    %v253 = vadd.f32 %v252, 1.0
    %v254 = vrcp.pop %v253
    %v255 = vmul.f32 %v253, %v254
    %v256 = vsub.f32 1.0, %v255
    %v257 = vmul.f32 %v254, %v256
    %v258 = vadd.f32 %v254, %v257
    %vm259 = vweird.f32 %v253
    %vm260 = vweird.f32 %v254
    %vm261 = vmor %vm259, %vm260
    %v262 = vsel %vm261, %v254, %v258
    %v263 = vand.u32 2147483647, %v253
    %vm264 = vcmp.eq.f32.partialorder %v263, 8.507059e+37
    %v265 = vand.u32 %v253, 2147483648
    %v266 = vor.u32 1.1754944e-38, %v265
    %v267 = vsel %vm264, %v266, %v262
    %v268 = vmul.f32 1.0, %v267
    %v269 = vtanh.pop %v249
    %v270 = vmul.f32 %v268, %v215
    %272 = vrot.lane.b32.xlu0 %v269, 64
    %v273 = vpop.permute.xlu0 %272
    %v275 = vmul.f32 %v268, %v273
    %277 = vrot.lane.b32.xlu0 %v275, 32
    %v278 = vpop.permute.xlu0 %277
    %v280 = vadd.f32 %v270, %v278
    %v281 = vtanh.pop %v280
    %283 = vrot.lane.b32.xlu0 %v281, 64
    %v284 = vpop.permute.xlu0 %283
    %v286 = vmul.f32 %v268, %v284
    %s287 = scalar_lea.vmem [#allocation2], 8
    %v288 = vld [vmem:[%s287] sm:$0xf]
    %290 = vrot.lane.b32.xlu0 %v286, 32
    %v291 = vpop.permute.xlu0 %290
    %v292 = vsel %vm98, %v291, 0
    %294 = vmatpush.msra.mxu0 0.0
    %295 = vmatpush.msra.mxu0 0.0
    %296 = vmatpush.msra.mxu0 0.0
    %297 = vmatpush.msra.mxu0 0.0
    %298 = vmatpush.msra.mxu0 0.0
    %299 = vmatpush.msra.mxu0 0.0
    %300 = vmatpush.msra.mxu0 0.0
    %301 = vmatpush.msra.mxu0 0.0
    %302 = vmatpush.msra.mxu0 0.0
    %303 = vmatpush.msra.mxu0 0.0
    %304 = vmatpush.msra.mxu0 0.0
    %305 = vmatpush.msra.mxu0 0.0
    %306 = vmatpush.msra.mxu0 %v159
    %307 = vmatpush.msra.mxu0 %v158
    %308 = vmatpush.msra.mxu0 %v157
    %309 = vmatpush.msra.mxu0 %v156
    %310 = vmatmul.f32.gmra.mxu0 %v292
    %v311 = vpop.f32.mrf.mxu0
    %v312 = vadd.f32 0.0, %v311
    %313 = vdwg.mxu0
    %v314 = vadd.f32 %v288, %v312
    %v315 = vxor.u32 %v314, 2147483648
    %v316 = vmul.f32 %v315, 1.442695
    %v317 = vpow.pop %v316
    %v318 = vadd.f32 %v317, 1.0
    %v319 = vrcp.pop %v318
    %v320 = vmul.f32 %v318, %v319
    %v321 = vsub.f32 1.0, %v320
    %v322 = vmul.f32 %v319, %v321
    %v323 = vadd.f32 %v319, %v322
    %vm324 = vweird.f32 %v318
    %vm325 = vweird.f32 %v319
    %vm326 = vmor %vm324, %vm325
    %v327 = vsel %vm326, %v319, %v323
    %v328 = vand.u32 2147483647, %v318
    %vm329 = vcmp.eq.f32.partialorder %v328, 8.507059e+37
    %v330 = vand.u32 %v318, 2147483648
    %v331 = vor.u32 1.1754944e-38, %v330
    %v332 = vsel %vm329, %v331, %v327
    %v333 = vmul.f32 1.0, %v332
    %v334 = vtanh.pop %v314
    %v335 = vmul.f32 %v333, %v280
    %337 = vrot.lane.b32.xlu0 %v334, 64
    %v338 = vpop.permute.xlu0 %337
    %v340 = vmul.f32 %v333, %v338
    %342 = vrot.lane.b32.xlu0 %v340, 32
    %v343 = vpop.permute.xlu0 %342
    %v345 = vadd.f32 %v335, %v343
    %v346 = vtanh.pop %v345
    %348 = vrot.lane.b32.xlu0 %v346, 64
    %v349 = vpop.permute.xlu0 %348
    %v351 = vmul.f32 %v333, %v349
    %s352 = scalar_lea.vmem [#allocation2], 12
    %v353 = vld [vmem:[%s352] sm:$0xf]
    %355 = vrot.lane.b32.xlu0 %v351, 32
    %v356 = vpop.permute.xlu0 %355
    %v357 = vsel %vm98, %v356, 0
    %359 = vmatpush.msra.mxu0 0.0
    %360 = vmatpush.msra.mxu0 0.0
    %361 = vmatpush.msra.mxu0 0.0
    %362 = vmatpush.msra.mxu0 0.0
    %363 = vmatpush.msra.mxu0 0.0
    %364 = vmatpush.msra.mxu0 0.0
    %365 = vmatpush.msra.mxu0 0.0
    %366 = vmatpush.msra.mxu0 0.0
    %367 = vmatpush.msra.mxu0 0.0
    %368 = vmatpush.msra.mxu0 0.0
    %369 = vmatpush.msra.mxu0 0.0
    %370 = vmatpush.msra.mxu0 0.0
    %371 = vmatpush.msra.mxu0 %v159
    %372 = vmatpush.msra.mxu0 %v158
    %373 = vmatpush.msra.mxu0 %v157
    %374 = vmatpush.msra.mxu0 %v156
    %375 = vmatmul.f32.gmra.mxu0 %v357
    %v376 = vpop.f32.mrf.mxu0
    %v377 = vadd.f32 0.0, %v376
    %378 = vdwg.mxu0
    %v379 = vadd.f32 %v353, %v377
    %v380 = vxor.u32 %v379, 2147483648
    %v381 = vmul.f32 %v380, 1.442695
    %v382 = vpow.pop %v381
    %v383 = vadd.f32 %v382, 1.0
    %v384 = vrcp.pop %v383
    %v385 = vmul.f32 %v383, %v384
    %v386 = vsub.f32 1.0, %v385
    %v387 = vmul.f32 %v384, %v386
    %v388 = vadd.f32 %v384, %v387
    %vm389 = vweird.f32 %v383
    %vm390 = vweird.f32 %v384
    %vm391 = vmor %vm389, %vm390
    %v392 = vsel %vm391, %v384, %v388
    %v393 = vand.u32 2147483647, %v383
    %vm394 = vcmp.eq.f32.partialorder %v393, 8.507059e+37
    %v395 = vand.u32 %v383, 2147483648
    %v396 = vor.u32 1.1754944e-38, %v395
    %v397 = vsel %vm394, %v396, %v392
    %v398 = vmul.f32 1.0, %v397
    %v399 = vtanh.pop %v379
    %v400 = vmul.f32 %v398, %v345
    %402 = vrot.lane.b32.xlu0 %v399, 64
    %v403 = vpop.permute.xlu0 %402
    %v405 = vmul.f32 %v398, %v403
    %407 = vrot.lane.b32.xlu0 %v405, 32
    %v408 = vpop.permute.xlu0 %407
    %v410 = vadd.f32 %v400, %v408
    %v411 = vtanh.pop %v410
    %413 = vrot.lane.b32.xlu0 %v411, 64
    %v414 = vpop.permute.xlu0 %413
    %v416 = vmul.f32 %v398, %v414
    %s417 = scalar_lea.vmem [#allocation2], 16
    %v418 = vld [vmem:[%s417] sm:$0xf]
    %420 = vrot.lane.b32.xlu0 %v416, 32
    %v421 = vpop.permute.xlu0 %420
    %v422 = vsel %vm98, %v421, 0
    %424 = vmatpush.msra.mxu0 0.0
    %425 = vmatpush.msra.mxu0 0.0
    %426 = vmatpush.msra.mxu0 0.0
    %427 = vmatpush.msra.mxu0 0.0
    %428 = vmatpush.msra.mxu0 0.0
    %429 = vmatpush.msra.mxu0 0.0
    %430 = vmatpush.msra.mxu0 0.0
    %431 = vmatpush.msra.mxu0 0.0
    %432 = vmatpush.msra.mxu0 0.0
    %433 = vmatpush.msra.mxu0 0.0
    %434 = vmatpush.msra.mxu0 0.0
    %435 = vmatpush.msra.mxu0 0.0
    %436 = vmatpush.msra.mxu0 %v159
    %437 = vmatpush.msra.mxu0 %v158
    %438 = vmatpush.msra.mxu0 %v157
    %439 = vmatpush.msra.mxu0 %v156
    %440 = vmatmul.f32.gmra.mxu0 %v422
    %v441 = vpop.f32.mrf.mxu0
    %v442 = vadd.f32 0.0, %v441
    %443 = vdwg.mxu0
    %v444 = vadd.f32 %v418, %v442
    %v445 = vxor.u32 %v444, 2147483648
    %v446 = vmul.f32 %v445, 1.442695
    %v447 = vpow.pop %v446
    %v448 = vadd.f32 %v447, 1.0
    %v449 = vrcp.pop %v448
    %v450 = vmul.f32 %v448, %v449
    %v451 = vsub.f32 1.0, %v450
    %v452 = vmul.f32 %v449, %v451
    %v453 = vadd.f32 %v449, %v452
    %vm454 = vweird.f32 %v448
    %vm455 = vweird.f32 %v449
    %vm456 = vmor %vm454, %vm455
    %v457 = vsel %vm456, %v449, %v453
    %v458 = vand.u32 2147483647, %v448
    %vm459 = vcmp.eq.f32.partialorder %v458, 8.507059e+37
    %v460 = vand.u32 %v448, 2147483648
    %v461 = vor.u32 1.1754944e-38, %v460
    %v462 = vsel %vm459, %v461, %v457
    %v463 = vmul.f32 1.0, %v462
    %v464 = vtanh.pop %v444
    %v465 = vmul.f32 %v463, %v410
    %467 = vrot.lane.b32.xlu0 %v464, 64
    %v468 = vpop.permute.xlu0 %467
    %v470 = vmul.f32 %v463, %v468
    %472 = vrot.lane.b32.xlu0 %v470, 32
    %v473 = vpop.permute.xlu0 %472
    %v475 = vadd.f32 %v465, %v473
    %v476 = vtanh.pop %v475
    %478 = vrot.lane.b32.xlu0 %v476, 64
    %v479 = vpop.permute.xlu0 %478
    %v481 = vmul.f32 %v463, %v479
    %s482 = scalar_lea.vmem [#allocation2], 20
    %v483 = vld [vmem:[%s482] sm:$0xf]
    %485 = vrot.lane.b32.xlu0 %v481, 32
    %v486 = vpop.permute.xlu0 %485
    %v487 = vsel %vm98, %v486, 0
    %489 = vmatpush.msra.mxu0 0.0
    %490 = vmatpush.msra.mxu0 0.0
    %491 = vmatpush.msra.mxu0 0.0
    %492 = vmatpush.msra.mxu0 0.0
    %493 = vmatpush.msra.mxu0 0.0
    %494 = vmatpush.msra.mxu0 0.0
    %495 = vmatpush.msra.mxu0 0.0
    %496 = vmatpush.msra.mxu0 0.0
    %497 = vmatpush.msra.mxu0 0.0
    %498 = vmatpush.msra.mxu0 0.0
    %499 = vmatpush.msra.mxu0 0.0
    %500 = vmatpush.msra.mxu0 0.0
    %501 = vmatpush.msra.mxu0 %v159
    %502 = vmatpush.msra.mxu0 %v158
    %503 = vmatpush.msra.mxu0 %v157
    %504 = vmatpush.msra.mxu0 %v156
    %505 = vmatmul.f32.gmra.mxu0 %v487
    %v506 = vpop.f32.mrf.mxu0
    %v507 = vadd.f32 0.0, %v506
    %508 = vdwg.mxu0
    %v509 = vadd.f32 %v483, %v507
    %v510 = vxor.u32 %v509, 2147483648
    %v511 = vmul.f32 %v510, 1.442695
    %v512 = vpow.pop %v511
    %v513 = vadd.f32 %v512, 1.0
    %v514 = vrcp.pop %v513
    %v515 = vmul.f32 %v513, %v514
    %v516 = vsub.f32 1.0, %v515
    %v517 = vmul.f32 %v514, %v516
    %v518 = vadd.f32 %v514, %v517
    %vm519 = vweird.f32 %v513
    %vm520 = vweird.f32 %v514
    %vm521 = vmor %vm519, %vm520
    %v522 = vsel %vm521, %v514, %v518
    %v523 = vand.u32 2147483647, %v513
    %vm524 = vcmp.eq.f32.partialorder %v523, 8.507059e+37
    %v525 = vand.u32 %v513, 2147483648
    %v526 = vor.u32 1.1754944e-38, %v525
    %v527 = vsel %vm524, %v526, %v522
    %v528 = vmul.f32 1.0, %v527
    %v529 = vtanh.pop %v509
    %v530 = vmul.f32 %v528, %v475
    %532 = vrot.lane.b32.xlu0 %v529, 64
    %v533 = vpop.permute.xlu0 %532
    %v535 = vmul.f32 %v528, %v533
    %537 = vrot.lane.b32.xlu0 %v535, 32
    %v538 = vpop.permute.xlu0 %537
    %v540 = vadd.f32 %v530, %v538
    %v541 = vtanh.pop %v540
    %543 = vrot.lane.b32.xlu0 %v541, 64
    %v544 = vpop.permute.xlu0 %543
    %v546 = vmul.f32 %v528, %v544
    %s547 = scalar_lea.vmem [#allocation2], 24
    %v548 = vld [vmem:[%s547] sm:$0xf]
    %550 = vrot.lane.b32.xlu0 %v546, 32
    %v551 = vpop.permute.xlu0 %550
    %v552 = vsel %vm98, %v551, 0
    %554 = vmatpush.msra.mxu0 0.0
    %555 = vmatpush.msra.mxu0 0.0
    %556 = vmatpush.msra.mxu0 0.0
    %557 = vmatpush.msra.mxu0 0.0
    %558 = vmatpush.msra.mxu0 0.0
    %559 = vmatpush.msra.mxu0 0.0
    %560 = vmatpush.msra.mxu0 0.0
    %561 = vmatpush.msra.mxu0 0.0
    %562 = vmatpush.msra.mxu0 0.0
    %563 = vmatpush.msra.mxu0 0.0
    %564 = vmatpush.msra.mxu0 0.0
    %565 = vmatpush.msra.mxu0 0.0
    %566 = vmatpush.msra.mxu0 %v159
    %567 = vmatpush.msra.mxu0 %v158
    %568 = vmatpush.msra.mxu0 %v157
    %569 = vmatpush.msra.mxu0 %v156
    %570 = vmatmul.f32.gmra.mxu0 %v552
    %v571 = vpop.f32.mrf.mxu0
    %v572 = vadd.f32 0.0, %v571
    %573 = vdwg.mxu0
    %v574 = vadd.f32 %v548, %v572
    %v575 = vxor.u32 %v574, 2147483648
    %v576 = vmul.f32 %v575, 1.442695
    %v577 = vpow.pop %v576
    %v578 = vadd.f32 %v577, 1.0
    %v579 = vrcp.pop %v578
    %v580 = vmul.f32 %v578, %v579
    %v581 = vsub.f32 1.0, %v580
    %v582 = vmul.f32 %v579, %v581
    %v583 = vadd.f32 %v579, %v582
    %vm584 = vweird.f32 %v578
    %vm585 = vweird.f32 %v579
    %vm586 = vmor %vm584, %vm585
    %v587 = vsel %vm586, %v579, %v583
    %v588 = vand.u32 2147483647, %v578
    %vm589 = vcmp.eq.f32.partialorder %v588, 8.507059e+37
    %v590 = vand.u32 %v578, 2147483648
    %v591 = vor.u32 1.1754944e-38, %v590
    %v592 = vsel %vm589, %v591, %v587
    %v593 = vmul.f32 1.0, %v592
    %v594 = vtanh.pop %v574
    %v595 = vmul.f32 %v593, %v540
    %597 = vrot.lane.b32.xlu0 %v594, 64
    %v598 = vpop.permute.xlu0 %597
    %v600 = vmul.f32 %v593, %v598
    %602 = vrot.lane.b32.xlu0 %v600, 32
    %v603 = vpop.permute.xlu0 %602
    %v605 = vadd.f32 %v595, %v603
    %v606 = vtanh.pop %v605
    %608 = vrot.lane.b32.xlu0 %v606, 64
    %v609 = vpop.permute.xlu0 %608
    %v611 = vmul.f32 %v593, %v609
    %s612 = scalar_lea.vmem [#allocation2], 28
    %v613 = vld [vmem:[%s612] sm:$0xf]
    %615 = vrot.lane.b32.xlu0 %v611, 32
    %v616 = vpop.permute.xlu0 %615
    %v617 = vsel %vm98, %v616, 0
    %619 = vmatpush.msra.mxu0 0.0
    %620 = vmatpush.msra.mxu0 0.0
    %621 = vmatpush.msra.mxu0 0.0
    %622 = vmatpush.msra.mxu0 0.0
    %623 = vmatpush.msra.mxu0 0.0
    %624 = vmatpush.msra.mxu0 0.0
    %625 = vmatpush.msra.mxu0 0.0
    %626 = vmatpush.msra.mxu0 0.0
    %627 = vmatpush.msra.mxu0 0.0
    %628 = vmatpush.msra.mxu0 0.0
    %629 = vmatpush.msra.mxu0 0.0
    %630 = vmatpush.msra.mxu0 0.0
    %631 = vmatpush.msra.mxu0 %v159
    %632 = vmatpush.msra.mxu0 %v158
    %633 = vmatpush.msra.mxu0 %v157
    %634 = vmatpush.msra.mxu0 %v156
    %635 = vmatmul.f32.gmra.mxu0 %v617
    %v636 = vpop.f32.mrf.mxu0
    %v637 = vadd.f32 0.0, %v636
    %638 = vdwg.mxu0
    %v639 = vadd.f32 %v613, %v637
    %v640 = vxor.u32 %v639, 2147483648
    %v641 = vmul.f32 %v640, 1.442695
    %v642 = vpow.pop %v641
    %v643 = vadd.f32 %v642, 1.0
    %v644 = vrcp.pop %v643
    %v645 = vmul.f32 %v643, %v644
    %v646 = vsub.f32 1.0, %v645
    %v647 = vmul.f32 %v644, %v646
    %v648 = vadd.f32 %v644, %v647
    %vm649 = vweird.f32 %v643
    %vm650 = vweird.f32 %v644
    %vm651 = vmor %vm649, %vm650
    %v652 = vsel %vm651, %v644, %v648
    %v653 = vand.u32 2147483647, %v643
    %vm654 = vcmp.eq.f32.partialorder %v653, 8.507059e+37
    %v655 = vand.u32 %v643, 2147483648
    %v656 = vor.u32 1.1754944e-38, %v655
    %v657 = vsel %vm654, %v656, %v652
    %v658 = vmul.f32 1.0, %v657
    %v659 = vtanh.pop %v639
    %v660 = vmul.f32 %v658, %v605
    %662 = vrot.lane.b32.xlu0 %v659, 64
    %v663 = vpop.permute.xlu0 %662
    %v665 = vmul.f32 %v658, %v663
    %667 = vrot.lane.b32.xlu0 %v665, 32
    %v668 = vpop.permute.xlu0 %667
    %v670 = vadd.f32 %v660, %v668
    %v671 = vtanh.pop %v670
    %673 = vrot.lane.b32.xlu0 %v671, 64
    %v674 = vpop.permute.xlu0 %673
    %v676 = vmul.f32 %v658, %v674
    %v677 = vld [vmem:[%s4] sm:$0xff]
    %v678 = vld [vmem:[%s4 + $0x8] sm:$0xff]
    %v679 = vld [vmem:[%s4 + $0x10] sm:$0xff]
    %v680 = vld [vmem:[%s4 + $0x18] sm:$0xff]
    %v681 = vld [vmem:[%s5] sm:$0x1]
    %v683 = vperm.slane %v681, 0
    %686 = vrot.lane.b32.xlu0 %v676, 32
    %v687 = vpop.permute.xlu0 %686
    %v688 = vsel %vm98, %v687, 0
    %690 = vmatpush.msra.mxu0 0.0
    %691 = vmatpush.msra.mxu0 0.0
    %692 = vmatpush.msra.mxu0 0.0
    %693 = vmatpush.msra.mxu0 0.0
    %694 = vmatpush.msra.mxu0 0.0
    %695 = vmatpush.msra.mxu0 0.0
    %696 = vmatpush.msra.mxu0 0.0
    %697 = vmatpush.msra.mxu0 0.0
    %698 = vmatpush.msra.mxu0 0.0
    %699 = vmatpush.msra.mxu0 0.0
    %700 = vmatpush.msra.mxu0 0.0
    %701 = vmatpush.msra.mxu0 0.0
    %702 = vmatpush.msra.mxu0 %v680
    %703 = vmatpush.msra.mxu0 %v679
    %704 = vmatpush.msra.mxu0 %v678
    %705 = vmatpush.msra.mxu0 %v677
    %706 = vmatmul.f32.gmra.mxu0 %v688
    %v707 = vpop.f32.mrf.mxu0
    %v708 = vadd.f32 %v683, %v707
    %709 = vdwg.mxu0
    %vm710 = vcmask 11264
    %v711 = vsel %vm710, %v708, -inf
    %712 = vmax.xlane.f32.xlu0 %v711
    %v713 = vpop.xlane.xlu0 %712
    %v714 = vsub.f32 %v708, %v713
    %v715 = vmul.f32 %v714, 1.442695
    %v716 = vpow.pop %v715
    %v717 = vsel %vm710, %v716, 0.0
    %718 = vadd.xlane.f32.xlu0 %v717
    %v719 = vpop.xlane.xlu0 %718
    %v720 = vlog2.pop %v719
    %v721 = vmul.f32 %v720, 0.6931472
    %v722 = vsub.f32 %v714, %v721
    %723 = vst.msk [vmem:[%s6] sm:$0xf] %vm710, %v722
    // Predicated region
    $region34: #{tpu_custom_call.1} parent=1 // pred_check
      _
    $region35: #{tpu_custom_call.1} parent=1 // pred_check_branch
      %725 = sbr.rel (0) target = $region37
    $region36: #{tpu_custom_call.1} parent=1 // pred_region
      _
    $region37: #{tpu_custom_call.1} parent=1 // pred_fallthru
      _
    // Predicated region
    $region38: #{tpu_custom_call.1} parent=1 // pred_check
      _
    $region39: #{tpu_custom_call.1} parent=1 // pred_check_branch
      %727 = sbr.rel (0) target = $region41
    $region40: #{tpu_custom_call.1} parent=1 // pred_region
      _
    $region41: #{tpu_custom_call.1} parent=1 // pred_fallthru
      _
    %728 = vsyncpa [#allocation4], 1
    %729 = vsyncpa [#allocation6], 1

</llo_original>
